<compile_context>
chip_gen: v6e
topology: v6e:2x2x1
jax: 0.10.0
libtpu: 0.0.40
codegen_flags: <defaults>
</compile_context>

<pallas_src>
import jax
import jax.numpy as jnp
from jax.experimental import pallas as pl
from jax.experimental.pallas import tpu as pltpu


def _euclidean_distance_kernel(xt_ref, p_ref, o_ref):
    """One batch tile of pairwise Euclidean distances, N on the lane axis.

    xt_ref: (D, tN) f32  batch features, lane-dense along N
    p_ref : (P, D)  f32  prototypes, VMEM-resident across the grid
    o_ref : (P, tN) f32  output tile (one lane-dense row per prototype)
    """
    d = xt_ref.shape[0]                       # static (D == 2)
    acc = jnp.zeros(o_ref.shape, jnp.float32)
    for k in range(d):                        # static unroll, D is tiny
        # (P,1) column (lane-broadcast) minus (1,tN) row (sublane-broadcast)
        # -> full (P,tN) VPU work, no transpose, no cross-lane reduce.
        diff = p_ref[:, k:k + 1] - xt_ref[k:k + 1, :]
        acc = acc + diff * diff
    o_ref[...] = jnp.sqrt(acc)


def _choose_tile_n(n, tile_n):
    """Pick a lane-dense batch tile (multiple of 128) that never exceeds N."""
    if n <= 128:
        return n                              # single block, full-extent lane dim
    tn = max(128, (min(tile_n, n) // 128) * 128)
    # Ensure >= 2 grid steps for larger batches so both v7x TensorCores get
    # work on the "parallel" N axis (no effect on single-TC v5e/v6e).
    if n >= 256 and pl.cdiv(n, tn) < 2:
        tn = max(128, ((pl.cdiv(n, 2) + 127) // 128) * 128)
    return tn


def euclidean_distance_pallas(x, protos, *, tile_n=8192):
    """Pairwise Euclidean distances between rows of x (N,D) and protos (P,D)."""
    x = jnp.asarray(x, jnp.float32)
    protos = jnp.asarray(protos, jnp.float32)
    n, d = x.shape
    p, d2 = protos.shape
    assert d == d2

    # Lane-dense input layout: features on sublanes, batch on lanes.
    xt = x.T                                   # (D, N)

    tn = _choose_tile_n(n, tile_n)
    grid_n = pl.cdiv(n, tn)

    out_t = pl.pallas_call(
        _euclidean_distance_kernel,
        out_shape=jax.ShapeDtypeStruct((p, n), jnp.float32),
        grid_spec=pl.GridSpec(
            grid=(grid_n,),
            in_specs=[
                pl.BlockSpec((d, tn), lambda i: (0, i)),   # x tile, lanes = N
                pl.BlockSpec((p, d), lambda i: (0, 0)),    # protos, resident
            ],
            out_specs=pl.BlockSpec((p, tn), lambda i: (0, i)),
        ),
        compiler_params=pltpu.CompilerParams(
            dimension_semantics=("parallel",),             # 2 TCs on v7x
        ),
    )(xt, protos)
    return out_t.T                              # (N, P)


class GLVQModel:
    """Mirrors the PyTorch Model: Prototypes1D(input_dim=2, ppc=3, nclasses=3)."""

    def __init__(self, key):
        input_dim = 2
        prototypes_per_class = 3
        nclasses = 3
        n_protos = prototypes_per_class * nclasses
        # TODO(synk): the real 'stratified_random' initializer samples
        # prototypes from per-class training data; with no dataset in-script we
        # use standard-normal prototypes (same scale as standardized inputs).
        self.prototypes = jax.random.normal(
            key, (n_protos, input_dim), dtype=jnp.float32
        )
        # Stratified labels: [0,0,0,1,1,1,2,2,2]
        self.prototype_labels = jnp.repeat(
            jnp.arange(nclasses, dtype=jnp.int32), prototypes_per_class
        )

    def forward(self, x, *, tile_n=8192):
        dis = euclidean_distance_pallas(x, self.prototypes, tile_n=tile_n)
        return dis, self.prototype_labels


def _reference_distances(x, protos):
    return jnp.sqrt(
        jnp.sum((x[:, None, :] - protos[None, :, :]) ** 2, axis=-1)
    )


if __name__ == "__main__":
    key = jax.random.PRNGKey(0)
    k_proto, k_x1, k_x2, k_x3 = jax.random.split(key, 4)

    model = GLVQModel(k_proto)

    # Small batch of standardized 2D Iris-like inputs (single full-extent tile).
    x = jax.random.normal(k_x1, (8, 2), dtype=jnp.float32)
    dis, plabels = model.forward(x)
    dis = jax.block_until_ready(dis)
    assert dis.shape == (8, 9)
    assert plabels.shape == (9,)
    ref = _reference_distances(x, model.prototypes)
    assert jnp.allclose(dis, ref, atol=1e-5), "distance mismatch vs reference"

    # Non-128 batch below one lane group: full-extent lane block path.
    x2 = jax.random.normal(k_x2, (37, 2), dtype=jnp.float32)
    dis2, _ = model.forward(x2)
    dis2 = jax.block_until_ready(dis2)
    assert dis2.shape == (37, 9)
    ref2 = _reference_distances(x2, model.prototypes)
    assert jnp.allclose(dis2, ref2, atol=1e-5), "small-batch distance mismatch"

    # Multi-tile grid with a ragged last block (200 = 128 + 72) exercising the
    # parallel N axis and dropped out-of-bounds lanes.
    x3 = jax.random.normal(k_x3, (200, 2), dtype=jnp.float32)
    dis3, _ = model.forward(x3)
    dis3 = jax.block_until_ready(dis3)
    assert dis3.shape == (200, 9)
    ref3 = _reference_distances(x3, model.prototypes)
    assert jnp.allclose(dis3, ref3, atol=1e-5), "tiled/ragged distance mismatch"

    print("KERNEL_OK")
</pallas_src>

<mosaic_0001>
module attributes {stable_mosaic.version = 11 : i64} {
  func.func @_euclidean_distance_kernel(%arg0: i32, %arg1: memref<2x8xf32, #tpu.memory_space<vmem>>, %arg2: memref<9x2xf32, #tpu.memory_space<vmem>>, %arg3: memref<9x8xf32, #tpu.memory_space<vmem>>) attributes {dimension_semantics = [#tpu.dimension_semantics<parallel>], iteration_bounds = array<i64: 1>, scalar_prefetch = 0 : i64, scratch_operands = 0 : i64, tpu.core_type = #tpu.core_type<tc>, window_params = [{transform_indices = @transform_0, window_bounds = array<i64: 2, 8>}, {pipeline_mode = #tpu.pipeline_mode<synchronous>, transform_indices = @transform_1, window_bounds = array<i64: 9, 2>}, {transform_indices = @transform_2, window_bounds = array<i64: 9, 8>}]} {
    %cst = arith.constant 0.000000e+00 : f32
    %0 = vector.broadcast %cst : f32 to vector<9x8xf32>
    %c0 = arith.constant 0 : index
    %c0_0 = arith.constant 0 : index
    %1 = vector.load %arg2[%c0, %c0_0] : memref<9x2xf32, #tpu.memory_space<vmem>>, vector<9x1xf32>
    %c0_1 = arith.constant 0 : index
    %c0_2 = arith.constant 0 : index
    %2 = vector.load %arg1[%c0_1, %c0_2] : memref<2x8xf32, #tpu.memory_space<vmem>>, vector<1x8xf32>
    %3 = vector.broadcast %1 : vector<9x1xf32> to vector<9x8xf32>
    %4 = vector.broadcast %2 : vector<1x8xf32> to vector<9x8xf32>
    %5 = arith.subf %3, %4 : vector<9x8xf32>
    %6 = arith.mulf %5, %5 : vector<9x8xf32>
    %7 = arith.addf %0, %6 : vector<9x8xf32>
    %c0_3 = arith.constant 0 : index
    %c1 = arith.constant 1 : index
    %8 = vector.load %arg2[%c0_3, %c1] : memref<9x2xf32, #tpu.memory_space<vmem>>, vector<9x1xf32>
    %c1_4 = arith.constant 1 : index
    %c0_5 = arith.constant 0 : index
    %9 = vector.load %arg1[%c1_4, %c0_5] : memref<2x8xf32, #tpu.memory_space<vmem>>, vector<1x8xf32>
    %10 = vector.broadcast %8 : vector<9x1xf32> to vector<9x8xf32>
    %11 = vector.broadcast %9 : vector<1x8xf32> to vector<9x8xf32>
    %12 = arith.subf %10, %11 : vector<9x8xf32>
    %13 = arith.mulf %12, %12 : vector<9x8xf32>
    %14 = arith.addf %7, %13 : vector<9x8xf32>
    %15 = math.sqrt %14 : vector<9x8xf32>
    %c0_6 = arith.constant 0 : index
    %c0_7 = arith.constant 0 : index
    %16 = vector.load %arg3[%c0_6, %c0_7] : memref<9x8xf32, #tpu.memory_space<vmem>>, vector<9x8xf32>
    tpu.vector_store %arg3[%c0_6, %c0_7], %15 {strides = array<i32>} : memref<9x8xf32, #tpu.memory_space<vmem>>, vector<9x8xf32>,
    return
  }
  func.func @transform_0(%arg0: i32) -> (i32, i32) {
    %c0_i32 = arith.constant 0 : i32
    %c0_i32_0 = arith.constant 0 : i32
    return %c0_i32, %arg0 : i32, i32
  }
  func.func @transform_1(%arg0: i32) -> (i32, i32) {
    %c0_i32 = arith.constant 0 : i32
    %c0_i32_0 = arith.constant 0 : i32
    %c0_i32_1 = arith.constant 0 : i32
    return %c0_i32, %c0_i32_0 : i32, i32
  }
  func.func @transform_2(%arg0: i32) -> (i32, i32) {
    %c0_i32 = arith.constant 0 : i32
    %c0_i32_0 = arith.constant 0 : i32
    return %c0_i32, %arg0 : i32, i32
  }
}

</mosaic_0001>

<llo_original>
// kernel: tpu_custom_call.1
$region0: #{tpu_custom_call.1}
  #allocation0 [shape = 'u32[]', space=smem, size = 0x4, offset = 0x4, fixed_abs, tag = 'smem constant byte address 0x4 - core index']
  #allocation1 [shape = 'u32[144,128]{1,0:T(1,128)}', space=vmem, size = 0x12000, scoped, tag = 'internal scratch']
  %s0 = inlined_call_operand.vmem [shape: f32[2,8], index: 0, kind: input, shape index: {}]
  %s1 = inlined_call_operand.vmem [shape: f32[9,2], index: 1, kind: input, shape index: {}]
  %s2 = inlined_call_operand.vmem [shape: f32[9,8], index: 2, kind: output, shape index: {}]
  %s3 = sld [smem:[#allocation0]]
  $region18: #{tpu_custom_call.1} parent=0
    _
  %s5 = ssub.s32 1, %s3
  %s6 = scalar_select 0, %s5, %s3
  // Predicated region
  $region2: #{tpu_custom_call.1} parent=0 // pred_check
    _
  $region3: #{tpu_custom_call.1} parent=0 // pred_check_branch
    %8 = sbr.rel (0) target = $region5
  $region4: #{tpu_custom_call.1} parent=0 // pred_region
    _
  $region5: #{tpu_custom_call.1} parent=0 // pred_fallthru
    _
  // Predicated region
  $region6: #{tpu_custom_call.1} parent=0 // pred_check
    _
  $region7: #{tpu_custom_call.1} parent=0 // pred_check_branch
    %10 = sbr.rel (0) target = $region9
  $region8: #{tpu_custom_call.1} parent=0 // pred_region
    _
  $region9: #{tpu_custom_call.1} parent=0 // pred_fallthru
    _
  %v11 = vld [vmem:[%s1] sm:$0xff]
  %v12 = vld [vmem:[%s1 + $0x8] sm:$0x1]
  %v13 = vld [vmem:[%s0] sm:$0x1]
  %15 = vset.pattern.permute.xlu0 0
  %16 = vperm.xlu0 %15, %v11
  %v17 = vpop.permute.xlu0 %16
  %20 = vset.pattern.permute.xlu0 0
  %21 = vperm.xlu0 %20, %v12
  %v22 = vpop.permute.xlu0 %21
  %v24 = vlaneseq
  %v25 = vshrl.u32 %v24, 7
  %v26 = vsub.s32 0, %v25
  %v27 = vrot.slane %v13, %v26
  %v28 = vsub.f32 %v17, %v27
  %v29 = vsub.f32 %v22, %v27
  %v30 = vmul.f32 %v28, %v28
  %v31 = vmul.f32 %v29, %v29
  %v32 = vadd.f32 %v30, 0.0
  %v33 = vadd.f32 %v31, 0.0
  %v34 = vld [vmem:[%s0 + $0x1] sm:$0x1]
  %35 = vset.pattern.permute.xlu0 1
  %36 = vperm.xlu0 %35, %v11
  %v37 = vpop.permute.xlu0 %36
  %39 = vset.pattern.permute.xlu0 1
  %40 = vperm.xlu0 %39, %v12
  %v41 = vpop.permute.xlu0 %40
  %v43 = vlaneseq
  %v44 = vshrl.u32 %v43, 7
  %v45 = vsub.s32 0, %v44
  %v46 = vrot.slane %v34, %v45
  %v47 = vsub.f32 %v37, %v46
  %v48 = vsub.f32 %v41, %v46
  %v49 = vmul.f32 %v47, %v47
  %v50 = vmul.f32 %v48, %v48
  %v51 = vadd.f32 %v32, %v49
  %v52 = vadd.f32 %v33, %v50
  %v53 = vrsqrt.pop %v51
  %v54 = vmul.f32 %v51, %v53
  %vm55 = vcmp.eq.f32.partialorder %v51, inf
  %v56 = vsel %vm55, %v51, %v54
  %vm57 = vcmp.eq.f32.partialorder %v51, 0.0
  %v58 = vand.u32 %v51, 2147483648
  %v59 = vsel %vm57, %v58, %v56
  %v60 = vrsqrt.pop %v52
  %v61 = vmul.f32 %v52, %v60
  %vm62 = vcmp.eq.f32.partialorder %v52, inf
  %v63 = vsel %vm62, %v52, %v61
  %vm64 = vcmp.eq.f32.partialorder %v52, 0.0
  %v65 = vand.u32 %v52, 2147483648
  %v66 = vsel %vm64, %v65, %v63
  %vm67 = vcmask 64512
  %68 = vst.msk [vmem:[%s2] sm:$0xff] %vm67, %v59
  %vm69 = vcmask 57344
  %70 = vst.msk [vmem:[%s2 + $0x8] sm:$0x1] %vm69, %v66
  // Predicated region
  $region10: #{tpu_custom_call.1} parent=0 // pred_check
    _
  $region11: #{tpu_custom_call.1} parent=0 // pred_check_branch
    %72 = sbr.rel (0) target = $region13
  $region12: #{tpu_custom_call.1} parent=0 // pred_region
    _
  $region13: #{tpu_custom_call.1} parent=0 // pred_fallthru
    _
  // Predicated region
  $region14: #{tpu_custom_call.1} parent=0 // pred_check
    _
  $region15: #{tpu_custom_call.1} parent=0 // pred_check_branch
    %74 = sbr.rel (0) target = $region17
  $region16: #{tpu_custom_call.1} parent=0 // pred_region
    _
  $region17: #{tpu_custom_call.1} parent=0 // pred_fallthru
    _

</llo_original>
